<compile_context>
chip_gen: v7x
topology: tpu7x:2x2x1
jax: 0.10.0
libtpu: 0.0.40
codegen_flags: <defaults>
</compile_context>

<pallas_src>
import functools

import jax
import jax.numpy as jnp
from jax import lax
from jax.experimental import pallas as pl
from jax.experimental.pallas import tpu as pltpu


def _round_up(v, m):
    return ((v + m - 1) // m) * m


# ----------------------------------------------------------------------------
# Pallas kernel: num_steps Douglas-Rachford iterations for one batch tile.
#   x_ref : (TB, ND) padded DR iterate (padded lanes are exactly 0 and stay 0)
#   c_ref : (TB, ND) step-invariant affine offset  c = parms_eff @ Pt - (g/2) qvec
#   m_ref : (ND, ND) fused step matrix  M = I - (g/2) Qft - K Pt  (zero outside n_dim)
# ----------------------------------------------------------------------------
def _dr_iter_kernel(x_ref, c_ref, m_ref, out_ref, *, num_steps, x_dim, n_dim):
    x = x_ref[...]                                    # (TB, ND)
    ND = x.shape[-1]

    # Box bounds built in-kernel from an iota mask (no lb/ub DMAs). Kept (1, ND):
    # the VPU broadcasts row-vectors per vreg for free, no materialized (TB, ND).
    col = lax.broadcasted_iota(jnp.int32, (1, ND), 1)
    lb = jnp.where(col < x_dim, jnp.float32(-100.0), jnp.float32(0.0))
    ub = jnp.where(col < n_dim, jnp.float32(100.0), jnp.float32(0.0))

    m_dtype = m_ref.dtype

    def body(xk):
        # y_k = prox of box indicator (px.BoxConstraint); padded lanes clamp to 0.
        y = jnp.minimum(jnp.maximum(xk, lb), ub)
        # reflection point
        w = 2.0 * y - xk
        # fused gradient step + linearized-constraint projection: one MXU push.
        # M / c are indexed at the use site so the compiler keeps vreg pressure low.
        z = jnp.dot(w.astype(m_dtype), m_ref[...],
                    preferred_element_type=jnp.float32) + c_ref[...]
        # DR update
        return xk + (z - y)

    if num_steps <= 8:
        for _ in range(num_steps):                    # tiny trip count: full unroll
            x = body(x)
    else:
        # large counts: visible loop bounds vreg live ranges / code size
        x = lax.fori_loop(0, num_steps, lambda _, xx: body(xx), x, unroll=2)

    out_ref[...] = x


def dr_iterations_pallas(x0, c, M, *, num_steps, x_dim, n_dim, batch_tile=None):
    B, ND = x0.shape

    # Batch tile: round B up to the 8-sublane granule, cap at 256 (fills the
    # 256-wide v6e/v7x MXU; 128-wide v5e is also fully occupied).  We only get
    # multiple grid steps (and hence the v7x two-TC "parallel" split) when B is
    # large enough that every tile stays at the cap -- never split B=16 into
    # 8-row tiles that starve the MXU.
    if batch_tile is None:
        cap = 256
        bt = _round_up(max(B, 8), 8)
        batch_tile = bt if bt <= cap else cap

    B_pad = _round_up(max(B, batch_tile), batch_tile)
    if B_pad != B:
        pad = B_pad - B
        x0 = jnp.pad(x0, ((0, pad), (0, 0)))
        c = jnp.pad(c, ((0, pad), (0, 0)))

    grid = (B_pad // batch_tile,)

    kernel = functools.partial(_dr_iter_kernel, num_steps=num_steps,
                               x_dim=x_dim, n_dim=n_dim)

    # Fused math: one (TB,ND)x(ND,ND) matmul per DR step.
    flops = 2 * num_steps * B_pad * ND * ND
    m_bytes = int(M.size) * int(M.dtype.itemsize)
    bytes_accessed = 4 * (int(x0.size) + int(c.size) + B_pad * ND) + m_bytes
    cost = pl.CostEstimate(flops=int(flops), transcendentals=0,
                           bytes_accessed=int(bytes_accessed))

    # VMEM budget: derive the cap from the actual chip (v7x has only 64 MiB per
    # TensorCore; v5e/v6e have 128 MiB) and leave headroom for internal scratch.
    try:
        info = pltpu.get_tpu_info()
        vmem_cap = int(getattr(info, "vmem_capacity_bytes", 64 * 1024 * 1024))
    except Exception:
        vmem_cap = 64 * 1024 * 1024
    # TODO(synk): for very large n_dim also mark M with pipeline_mode=pl.Buffered(1)
    # (or DMA it once into scratch) so the grid-invariant constant is not
    # double-buffered; irrelevant at the 64 KiB size used here.
    const_bytes = 2 * m_bytes                       # default double-buffered constant
    tile_bytes = 4 * batch_tile * (ND + ND + ND)    # x, c, out tiles
    vmem_limit = int(min(int(0.75 * vmem_cap),
                         max(16 * 1024 * 1024,
                             4 * (const_bytes + 2 * tile_bytes))))

    out = pl.pallas_call(
        kernel,
        out_shape=jax.ShapeDtypeStruct((B_pad, ND), jnp.float32),
        grid=grid,
        in_specs=[
            pl.BlockSpec((batch_tile, ND), lambda i: (i, 0)),   # x0
            pl.BlockSpec((batch_tile, ND), lambda i: (i, 0)),   # c (step-invariant)
            pl.BlockSpec((ND, ND), lambda i: (0, 0)),           # M (resident)
        ],
        out_specs=pl.BlockSpec((batch_tile, ND), lambda i: (i, 0)),
        compiler_params=pltpu.CompilerParams(
            dimension_semantics=("parallel",),
            vmem_limit_bytes=vmem_limit),
        cost_estimate=cost,
    )(x0, c, M)
    return out[:B]


# ----------------------------------------------------------------------------
# Host-side constant prep (compute ONCE when A/Q/q are fixed module parameters).
# ----------------------------------------------------------------------------
def precompute_dr_constants(A, Q, q, *, gamma, x_dim, n_ineq, use_bf16=False):
    dtype = jnp.float32
    n_dim = x_dim + n_ineq                          # n_eq = 0 (pid == 2)
    ND = _round_up(n_dim, 128)                      # lane-dense padded feature dim

    A = A.astype(dtype)
    Q = Q.astype(dtype)
    q = q.astype(dtype)

    J = jnp.concatenate([A, jnp.eye(n_ineq, dtype=dtype)], axis=-1)   # (n_ineq, n_dim)
    Jt = J.T                                                          # (n_dim, n_ineq)
    Pt_s = jnp.linalg.solve(J @ J.T, J)                               # (J J^T)^{-1} J
    Qft = jnp.zeros((n_dim, n_dim), dtype).at[:x_dim, :x_dim].set(Q.T)
    qvec = jnp.concatenate([q, jnp.zeros((n_ineq,), dtype)]).reshape(1, n_dim)

    hg = gamma * 0.5
    K = Jt - hg * (Qft @ Jt)                                          # (n_dim, n_ineq)

    # Fused single-matmul DR step matrix.  Identity only on the first n_dim
    # diagonal entries; padded rows/cols are exactly 0 so padded lanes of the
    # iterate stay 0 through every step.
    M_s = jnp.eye(n_dim, dtype=dtype) - hg * Qft - K @ Pt_s           # (n_dim, n_dim)
    M = jnp.zeros((ND, ND), dtype).at[:n_dim, :n_dim].set(M_s)
    if use_bf16:
        # MXU is bf16-native; re-validate vs. the f32 reference before enabling.
        M = M.astype(jnp.bfloat16)

    return dict(M=M, Pt_s=Pt_s, Jt=Jt, qvec=qvec, hg=hg, n_dim=n_dim, ND=ND)


# ----------------------------------------------------------------------------
# SlackHotStart (warm start) — plain JAX glue.
# ----------------------------------------------------------------------------
def slack_hot_start(x, parms, A, Q, q, *, gamma, x_dim, n_ineq):
    # TODO(synk): batched complete QR (torch.linalg.qr) and torch.linalg.solve have no
    # clean Pallas TPU equivalent; this warm start is computed in plain JAX.
    B = x.shape[0]
    dtype = x.dtype
    x_init = x
    # xs = F([x; 0], parms) = A x - parms
    Fx0 = x @ A.T - parms
    slacks = -Fx0
    s_plus = jnp.concatenate([jnp.zeros((B, x_dim), dtype), jax.nn.relu(slacks)], axis=-1)
    gx = x @ Q.T + q
    grads = (gamma / 2.0) * jnp.concatenate([gx, jnp.zeros((B, n_ineq), dtype)], axis=-1)
    eta = s_plus + grads

    n_dim = x_dim + n_ineq
    J = jnp.concatenate([A, jnp.eye(n_ineq, dtype=A.dtype)], axis=-1)  # (n_ineq, n_dim)
    JFx = jnp.broadcast_to(J, (B, n_ineq, n_dim))
    Qc, _R = jnp.linalg.qr(jnp.swapaxes(JFx, 1, 2), mode="complete")
    Qr = Qc[:, :, :n_ineq]                        # range-space basis (robust to null_dim==0)

    xs_plus = jnp.concatenate([1000.0 * jnp.ones_like(x_init), jax.nn.relu(slacks)], axis=-1)
    P_diags = jnp.abs(xs_plus) + 0.001
    P_mats = jax.vmap(jnp.diag)(P_diags)          # (B, n_dim, n_dim)
    QTPQ = jnp.einsum("bji,bjk,bkl->bil", Qr, P_mats, Qr)

    xabs = jnp.concatenate([x_init, jnp.abs(slacks)], axis=-1)
    z = jnp.einsum("bij,bj->bi", P_mats, xabs - eta)
    z = jnp.einsum("bji,bj->bi", Qr, z)
    z = jnp.linalg.solve(QTPQ, z[..., None])[..., 0]
    z = jnp.einsum("bij,bj->bi", Qr, z)
    z = z + eta

    new_slacks = 2.0 * jax.nn.relu(slacks) - z[:, -n_ineq:]
    return jnp.concatenate([z[:, :-n_ineq], new_slacks], axis=-1)


# ----------------------------------------------------------------------------
# Full DRSolver forward.
# ----------------------------------------------------------------------------
def dr_solver_forward(x, parms, A, Q, q, *, x_dim, n_ineq, num_steps, gamma=1.0,
                      batch_tile=None, use_bf16=False, consts=None):
    dtype = jnp.float32
    x = x.astype(dtype)
    parms = parms.astype(dtype)

    if consts is None:
        consts = precompute_dr_constants(A, Q, q, gamma=gamma, x_dim=x_dim,
                                         n_ineq=n_ineq, use_bf16=use_bf16)
    n_dim, ND, hg = consts["n_dim"], consts["ND"], consts["hg"]

    # Step-invariant per-row affine offset of the fused DR step.
    parms_eff = parms + hg * (consts["qvec"] @ consts["Jt"])           # (B, n_ineq)
    c_s = parms_eff @ consts["Pt_s"] - hg * consts["qvec"]             # (B, n_dim)

    # ---- warm start (glue), then the DR iteration hot loop inside Pallas ----
    x0 = slack_hot_start(x, parms, A, Q, q, gamma=gamma, x_dim=x_dim, n_ineq=n_ineq)

    B = x.shape[0]
    x0_p = jnp.zeros((B, ND), dtype).at[:, :n_dim].set(x0)
    c_p = jnp.zeros((B, ND), dtype).at[:, :n_dim].set(c_s)

    xk = dr_iterations_pallas(x0_p, c_p, consts["M"],
                              num_steps=num_steps, x_dim=x_dim, n_dim=n_dim,
                              batch_tile=batch_tile)
    # forward returns x_k_new[:, :-n_ineq]  (== first x_dim coords since n_eq = 0)
    return xk[:, :x_dim]


# ----------------------------------------------------------------------------
if __name__ == "__main__":
    B, x_dim, n_ineq, num_steps = 16, 8, 4, 3
    gamma = 1.0

    key = jax.random.PRNGKey(0)
    kx, kp, ka, kq, kl = jax.random.split(key, 5)

    # Deterministic synthetic problem data (module "parameters").
    A = 0.3 * jax.random.normal(ka, (n_ineq, x_dim), dtype=jnp.float32)
    M0 = jax.random.normal(kq, (x_dim, x_dim), dtype=jnp.float32)
    Q = 0.5 * (M0 + M0.T) / jnp.sqrt(x_dim) + jnp.eye(x_dim, dtype=jnp.float32) * x_dim
    q = 0.1 * jax.random.normal(kl, (x_dim,), dtype=jnp.float32)

    # Deterministic inputs.
    x = jax.random.normal(kx, (B, x_dim), dtype=jnp.float32)
    parms = jax.random.normal(kp, (B, n_ineq), dtype=jnp.float32)

    # Constants precomputed once (fixed module parameters).
    consts = precompute_dr_constants(A, Q, q, gamma=gamma, x_dim=x_dim, n_ineq=n_ineq)

    out = dr_solver_forward(x, parms, A, Q, q,
                            x_dim=x_dim, n_ineq=n_ineq,
                            num_steps=num_steps, gamma=gamma, consts=consts)
    out = jax.block_until_ready(out)
    assert out.shape == (B, x_dim) and out.dtype == jnp.float32
    assert bool(jnp.all(jnp.isfinite(out)))

    # Pure-JAX reference of the (unfused) DR iterations to validate the algebraic fusion.
    def dr_ref(x0, parms_in):
        n_dim = x_dim + n_ineq
        J = jnp.concatenate([A, jnp.eye(n_ineq, dtype=jnp.float32)], axis=-1)
        Pt = jnp.linalg.solve(J @ J.T, J)
        Qft = jnp.zeros((n_dim, n_dim), jnp.float32).at[:x_dim, :x_dim].set(Q.T)
        qvec = jnp.concatenate([q, jnp.zeros((n_ineq,), jnp.float32)])
        lb = jnp.concatenate([-100.0 * jnp.ones((x_dim,)), jnp.zeros((n_ineq,))])
        ub = 100.0 * jnp.ones((n_dim,))
        xk = x0
        for _ in range(num_steps):
            y = jnp.clip(xk, lb, ub)
            w = 2.0 * y - xk
            grad = w @ Qft + qvec
            v = w - 0.5 * gamma * grad
            Fw = w @ J.T - parms_in
            resid = v @ J.T - (w @ J.T - Fw)
            z = v - resid @ Pt
            xk = xk + (z - y)
        return xk[:, :x_dim]

    x0_ref = slack_hot_start(x, parms, A, Q, q, gamma=gamma, x_dim=x_dim, n_ineq=n_ineq)
    ref = dr_ref(x0_ref, parms)
    assert bool(jnp.allclose(out, ref, atol=1e-3, rtol=1e-3))
    print("KERNEL_OK")
</pallas_src>

<mosaic_0001>
module attributes {stable_mosaic.version = 11 : i64} {
  func.func @_dr_iter_kernel(%arg0: i32, %arg1: memref<16x128xf32, #tpu.memory_space<vmem>>, %arg2: memref<16x128xf32, #tpu.memory_space<vmem>>, %arg3: memref<128x128xf32, #tpu.memory_space<vmem>>, %arg4: memref<16x128xf32, #tpu.memory_space<vmem>>) attributes {dimension_semantics = [#tpu.dimension_semantics<parallel>], iteration_bounds = array<i64: 1>, scalar_prefetch = 0 : i64, scratch_operands = 0 : i64, tpu.core_type = #tpu.core_type<tc>, window_params = [{transform_indices = @transform_0, window_bounds = array<i64: 16, 128>}, {transform_indices = @transform_1, window_bounds = array<i64: 16, 128>}, {pipeline_mode = #tpu.pipeline_mode<synchronous>, transform_indices = @transform_2, window_bounds = array<i64: 128, 128>}, {transform_indices = @transform_3, window_bounds = array<i64: 16, 128>}]} {
    %c0 = arith.constant 0 : index
    %c0_0 = arith.constant 0 : index
    %0 = vector.load %arg1[%c0, %c0_0] : memref<16x128xf32, #tpu.memory_space<vmem>>, vector<16x128xf32>
    %1 = tpu.iota {dimensions = array<i32: 1>} : vector<1x128xi32>
    %c8_i32 = arith.constant 8 : i32
    %2 = vector.broadcast %c8_i32 : i32 to vector<1x128xi32>
    %3 = arith.cmpi slt, %1, %2 : vector<1x128xi32>
    %cst = arith.constant -1.000000e+02 : f32
    %cst_1 = arith.constant 0.000000e+00 : f32
    %4 = vector.broadcast %cst : f32 to vector<1x128xf32>
    %5 = vector.broadcast %cst_1 : f32 to vector<1x128xf32>
    %6 = arith.select %3, %4, %5 : vector<1x128xi1>, vector<1x128xf32>
    %c12_i32 = arith.constant 12 : i32
    %7 = vector.broadcast %c12_i32 : i32 to vector<1x128xi32>
    %8 = arith.cmpi slt, %1, %7 : vector<1x128xi32>
    %cst_2 = arith.constant 1.000000e+02 : f32
    %cst_3 = arith.constant 0.000000e+00 : f32
    %9 = vector.broadcast %cst_2 : f32 to vector<1x128xf32>
    %10 = vector.broadcast %cst_3 : f32 to vector<1x128xf32>
    %11 = arith.select %8, %9, %10 : vector<1x128xi1>, vector<1x128xf32>
    %12 = vector.broadcast %6 : vector<1x128xf32> to vector<16x128xf32>
    %13 = arith.maximumf %0, %12 : vector<16x128xf32>
    %14 = vector.broadcast %11 : vector<1x128xf32> to vector<16x128xf32>
    %15 = arith.minimumf %13, %14 : vector<16x128xf32>
    %cst_4 = arith.constant 2.000000e+00 : f32
    %16 = vector.broadcast %cst_4 : f32 to vector<16x128xf32>
    %17 = arith.mulf %16, %15 : vector<16x128xf32>
    %18 = arith.subf %17, %0 : vector<16x128xf32>
    %c0_5 = arith.constant 0 : index
    %c0_6 = arith.constant 0 : index
    %19 = vector.load %arg3[%c0_5, %c0_6] : memref<128x128xf32, #tpu.memory_space<vmem>>, vector<128x128xf32>
    %cst_7 = arith.constant dense<0.000000e+00> : vector<16x128xf32>
    %20 = tpu.matmul %18, %19, %cst_7 {dimension_numbers = #tpu.dot_dimension_numbers<[1], [0], [0], [1], [0, 0, 1, 1], [], []>} : vector<16x128xf32>, vector<128x128xf32>, vector<16x128xf32> -> vector<16x128xf32>
    %c0_8 = arith.constant 0 : index
    %c0_9 = arith.constant 0 : index
    %21 = vector.load %arg2[%c0_8, %c0_9] : memref<16x128xf32, #tpu.memory_space<vmem>>, vector<16x128xf32>
    %22 = arith.addf %20, %21 : vector<16x128xf32>
    %23 = arith.subf %22, %15 : vector<16x128xf32>
    %24 = arith.addf %0, %23 : vector<16x128xf32>
    %25 = vector.broadcast %6 : vector<1x128xf32> to vector<16x128xf32>
    %26 = arith.maximumf %24, %25 : vector<16x128xf32>
    %27 = vector.broadcast %11 : vector<1x128xf32> to vector<16x128xf32>
    %28 = arith.minimumf %26, %27 : vector<16x128xf32>
    %cst_10 = arith.constant 2.000000e+00 : f32
    %29 = vector.broadcast %cst_10 : f32 to vector<16x128xf32>
    %30 = arith.mulf %29, %28 : vector<16x128xf32>
    %31 = arith.subf %30, %24 : vector<16x128xf32>
    %c0_11 = arith.constant 0 : index
    %c0_12 = arith.constant 0 : index
    %32 = vector.load %arg3[%c0_11, %c0_12] : memref<128x128xf32, #tpu.memory_space<vmem>>, vector<128x128xf32>
    %cst_13 = arith.constant dense<0.000000e+00> : vector<16x128xf32>
    %33 = tpu.matmul %31, %32, %cst_13 {dimension_numbers = #tpu.dot_dimension_numbers<[1], [0], [0], [1], [0, 0, 1, 1], [], []>} : vector<16x128xf32>, vector<128x128xf32>, vector<16x128xf32> -> vector<16x128xf32>
    %c0_14 = arith.constant 0 : index
    %c0_15 = arith.constant 0 : index
    %34 = vector.load %arg2[%c0_14, %c0_15] : memref<16x128xf32, #tpu.memory_space<vmem>>, vector<16x128xf32>
    %35 = arith.addf %33, %34 : vector<16x128xf32>
    %36 = arith.subf %35, %28 : vector<16x128xf32>
    %37 = arith.addf %24, %36 : vector<16x128xf32>
    %38 = vector.broadcast %6 : vector<1x128xf32> to vector<16x128xf32>
    %39 = arith.maximumf %37, %38 : vector<16x128xf32>
    %40 = vector.broadcast %11 : vector<1x128xf32> to vector<16x128xf32>
    %41 = arith.minimumf %39, %40 : vector<16x128xf32>
    %cst_16 = arith.constant 2.000000e+00 : f32
    %42 = vector.broadcast %cst_16 : f32 to vector<16x128xf32>
    %43 = arith.mulf %42, %41 : vector<16x128xf32>
    %44 = arith.subf %43, %37 : vector<16x128xf32>
    %c0_17 = arith.constant 0 : index
    %c0_18 = arith.constant 0 : index
    %45 = vector.load %arg3[%c0_17, %c0_18] : memref<128x128xf32, #tpu.memory_space<vmem>>, vector<128x128xf32>
    %cst_19 = arith.constant dense<0.000000e+00> : vector<16x128xf32>
    %46 = tpu.matmul %44, %45, %cst_19 {dimension_numbers = #tpu.dot_dimension_numbers<[1], [0], [0], [1], [0, 0, 1, 1], [], []>} : vector<16x128xf32>, vector<128x128xf32>, vector<16x128xf32> -> vector<16x128xf32>
    %c0_20 = arith.constant 0 : index
    %c0_21 = arith.constant 0 : index
    %47 = vector.load %arg2[%c0_20, %c0_21] : memref<16x128xf32, #tpu.memory_space<vmem>>, vector<16x128xf32>
    %48 = arith.addf %46, %47 : vector<16x128xf32>
    %49 = arith.subf %48, %41 : vector<16x128xf32>
    %50 = arith.addf %37, %49 : vector<16x128xf32>
    %c0_22 = arith.constant 0 : index
    %c0_23 = arith.constant 0 : index
    %51 = vector.load %arg4[%c0_22, %c0_23] : memref<16x128xf32, #tpu.memory_space<vmem>>, vector<16x128xf32>
    tpu.vector_store %arg4[%c0_22, %c0_23], %50 {strides = array<i32>} : memref<16x128xf32, #tpu.memory_space<vmem>>, vector<16x128xf32>,
    return
  }
  func.func @transform_0(%arg0: i32) -> (i32, i32) {
    %c0_i32 = arith.constant 0 : i32
    %c0_i32_0 = arith.constant 0 : i32
    return %arg0, %c0_i32 : i32, i32
  }
  func.func @transform_1(%arg0: i32) -> (i32, i32) {
    %c0_i32 = arith.constant 0 : i32
    %c0_i32_0 = arith.constant 0 : i32
    return %arg0, %c0_i32 : i32, i32
  }
  func.func @transform_2(%arg0: i32) -> (i32, i32) {
    %c0_i32 = arith.constant 0 : i32
    %c0_i32_0 = arith.constant 0 : i32
    %c0_i32_1 = arith.constant 0 : i32
    return %c0_i32, %c0_i32_0 : i32, i32
  }
  func.func @transform_3(%arg0: i32) -> (i32, i32) {
    %c0_i32 = arith.constant 0 : i32
    %c0_i32_0 = arith.constant 0 : i32
    return %arg0, %c0_i32 : i32, i32
  }
}

</mosaic_0001>

<llo_original>
// kernel: tpu_custom_call.1
$region0: #{tpu_custom_call.1}
  #allocation0 [shape = 'u32[]', space=smem, size = 0x4, offset = 0x4, fixed_abs, tag = 'smem constant byte address 0x4 - core index']
  #allocation1 [shape = 'u32[144,128]{1,0:T(1,128)}', space=vmem, size = 0x12000, scoped, tag = 'internal scratch']
  %s0 = inlined_call_operand.hbm [shape: f32[16,128], index: 0, kind: input, shape index: {}]
  %s1 = inlined_call_operand.hbm [shape: f32[16,128], index: 1, kind: input, shape index: {}]
  %s2 = inlined_call_operand.hbm [shape: f32[128,128], index: 2, kind: input, shape index: {}]
  %s3 = inlined_call_operand.hbm [shape: f32[16,128], index: 3, kind: output, shape index: {}]
  %s4 = sld [smem:[#allocation0]]
  $region34: #{tpu_custom_call.1} parent=0
    _
  %s6 = ssub.s32 1, %s4
  %s7 = scalar_select 0, %s6, %s4
  $region1: #{tpu_custom_call.1} parent=0
    #allocation2 [shape = 'u8[8192]{0}', space=vmem, size = 0x2000, scoped, tag = 'input window, operand 0, single buffered']
    #allocation3 [shape = 's32[1]{0}', space=sflag, size = 0x4, scoped, tag = 'scoped memory for tpu_custom_call.1']
    #allocation4 [shape = 's32[1]{0}', space=sflag, size = 0x4, scoped, tag = 'scoped memory for tpu_custom_call.1']
    #allocation5 [shape = 'u8[8192]{0}', space=vmem, size = 0x2000, scoped, tag = 'input window, operand 1, single buffered']
    #allocation6 [shape = 's32[1]{0}', space=sflag, size = 0x4, scoped, tag = 'scoped memory for tpu_custom_call.1']
    #allocation7 [shape = 'u8[65536]{0}', space=vmem, size = 0x10000, scoped, tag = 'input window, operand 2, single buffered']
    #allocation8 [shape = 'u8[8192]{0}', space=vmem, size = 0x2000, scoped, tag = 'output window, operand 0, single buffered']
    %8 = vsyncpa [#allocation3], 0
    %9 = vsyncpa [#allocation6], 0
    %10 = vsyncpa [#allocation4], 0
    // Predicated region
    $region2: #{tpu_custom_call.1} parent=1 // pred_check
      _
    $region3: #{tpu_custom_call.1} parent=1 // pred_check_branch
      %12 = sbr.rel (0) target = $region5
    $region4: #{tpu_custom_call.1} parent=1 // pred_region
      %s14 = ssub.s32 256, 256
      %15 = vsyncadd [#allocation3], %s14
      %s16 = sshll.u32 [#allocation2], 4
      %s17 = int_to_ptr.vmem [resolvable:$true] %s16
      %22 = dma.hbm_to_vmem [thread:$0]  %s0, 256, %s17, [#allocation3], 128, 128, 8
    $region5: #{tpu_custom_call.1} parent=1 // pred_fallthru
      _
    // Predicated region
    $region6: #{tpu_custom_call.1} parent=1 // pred_check
      _
    $region7: #{tpu_custom_call.1} parent=1 // pred_check_branch
      %24 = sbr.rel (0) target = $region9
    $region8: #{tpu_custom_call.1} parent=1 // pred_region
      %s26 = ssub.s32 256, 256
      %27 = vsyncadd [#allocation6], %s26
      %s28 = sshll.u32 [#allocation5], 4
      %s29 = int_to_ptr.vmem [resolvable:$true] %s28
      %34 = dma.hbm_to_vmem [thread:$0]  %s1, 256, %s29, [#allocation6], 128, 128, 8
    $region9: #{tpu_custom_call.1} parent=1 // pred_fallthru
      _
    // Predicated region
    $region10: #{tpu_custom_call.1} parent=1 // pred_check
      _
    $region11: #{tpu_custom_call.1} parent=1 // pred_check_branch
      %36 = sbr.rel (0) target = $region13
    $region12: #{tpu_custom_call.1} parent=1 // pred_region
      %s38 = ssub.s32 2048, 2048
      %39 = vsyncadd [#allocation6], %s38
      %s40 = sshll.u32 [#allocation7], 4
      %s41 = int_to_ptr.vmem [resolvable:$true] %s40
      %46 = dma.hbm_to_vmem [thread:$0]  %s2, 2048, %s41, [#allocation6], 128, 128, 8
    $region13: #{tpu_custom_call.1} parent=1 // pred_fallthru
      _
    // Predicated region
    $region14: #{tpu_custom_call.1} parent=1 // pred_check
      _
    $region15: #{tpu_custom_call.1} parent=1 // pred_check_branch
      %48 = sbr.rel (0) target = $region17
    $region16: #{tpu_custom_call.1} parent=1 // pred_region
      %49 = dma.done [#allocation3], 256
    $region17: #{tpu_custom_call.1} parent=1 // pred_fallthru
      _
    // Predicated region
    $region18: #{tpu_custom_call.1} parent=1 // pred_check
      _
    $region19: #{tpu_custom_call.1} parent=1 // pred_check_branch
      %51 = sbr.rel (0) target = $region21
    $region20: #{tpu_custom_call.1} parent=1 // pred_region
      %52 = dma.done [#allocation6], 256
    $region21: #{tpu_custom_call.1} parent=1 // pred_fallthru
      _
    // Predicated region
    $region22: #{tpu_custom_call.1} parent=1 // pred_check
      _
    $region23: #{tpu_custom_call.1} parent=1 // pred_check_branch
      %54 = sbr.rel (0) target = $region25
    $region24: #{tpu_custom_call.1} parent=1 // pred_region
      %55 = dma.done [#allocation6], 2048
    $region25: #{tpu_custom_call.1} parent=1 // pred_fallthru
      _
    %v56 = vld [vmem:[#allocation2] sm:$0xff]
    %v57 = vld [vmem:[#allocation2 + $0x8] sm:$0xff]
    %v58 = vlaneseq
    %v59 = vand.u32 %v58, 127
    %vm60 = vcmp.lt.s32.totalorder %v59, 8
    %v61 = vsel %vm60, -100.0, 0.0
    %vm62 = vcmp.lt.s32.totalorder %v59, 12
    %v63 = vsel %vm62, 100.0, 0.0
    %v64 = vmax.f32 %v56, %v61
    %v65 = vmax.f32 %v57, %v61
    %v66 = vmin.f32 %v64, %v63
    %v67 = vmin.f32 %v65, %v63
    %v68 = vmul.f32 %v66, 2.0
    %v69 = vmul.f32 %v67, 2.0
    %v70 = vsub.f32 %v68, %v56
    %v71 = vsub.f32 %v69, %v57
    %v72 = vld [vmem:[#allocation7] sm:$0xff]
    %v73 = vld [vmem:[#allocation7 + $0x8] sm:$0xff]
    %v74 = vld [vmem:[#allocation7 + $0x10] sm:$0xff]
    %v75 = vld [vmem:[#allocation7 + $0x18] sm:$0xff]
    %v76 = vld [vmem:[#allocation7 + $0x20] sm:$0xff]
    %v77 = vld [vmem:[#allocation7 + $0x28] sm:$0xff]
    %v78 = vld [vmem:[#allocation7 + $0x30] sm:$0xff]
    %v79 = vld [vmem:[#allocation7 + $0x38] sm:$0xff]
    %v80 = vld [vmem:[#allocation7 + $0x40] sm:$0xff]
    %v81 = vld [vmem:[#allocation7 + $0x48] sm:$0xff]
    %v82 = vld [vmem:[#allocation7 + $0x50] sm:$0xff]
    %v83 = vld [vmem:[#allocation7 + $0x58] sm:$0xff]
    %v84 = vld [vmem:[#allocation7 + $0x60] sm:$0xff]
    %v85 = vld [vmem:[#allocation7 + $0x68] sm:$0xff]
    %v86 = vld [vmem:[#allocation7 + $0x70] sm:$0xff]
    %v87 = vld [vmem:[#allocation7 + $0x78] sm:$0xff]
    %v88 = vld [vmem:[#allocation5] sm:$0xff]
    %v89 = vld [vmem:[#allocation5 + $0x8] sm:$0xff]
    %90 = vmatprep.subr.mxu0 0.0
    %91 = vmatpush1.msra.mxu0 %v72
    %92 = vmatprep.subr.mxu0 0.0
    %93 = vmatpush1.msra.mxu0 %v73
    %94 = vmatprep.subr.mxu0 0.0
    %95 = vmatpush1.msra.mxu0 %v74
    %96 = vmatprep.subr.mxu0 0.0
    %97 = vmatpush1.msra.mxu0 %v75
    %98 = vmatprep.subr.mxu0 0.0
    %99 = vmatpush1.msra.mxu0 %v76
    %100 = vmatprep.subr.mxu0 0.0
    %101 = vmatpush1.msra.mxu0 %v77
    %102 = vmatprep.subr.mxu0 0.0
    %103 = vmatpush1.msra.mxu0 %v78
    %104 = vmatprep.subr.mxu0 0.0
    %105 = vmatpush1.msra.mxu0 %v79
    %106 = vmatprep.subr.mxu0 0.0
    %107 = vmatpush1.msra.mxu0 %v80
    %108 = vmatprep.subr.mxu0 0.0
    %109 = vmatpush1.msra.mxu0 %v81
    %110 = vmatprep.subr.mxu0 0.0
    %111 = vmatpush1.msra.mxu0 %v82
    %112 = vmatprep.subr.mxu0 0.0
    %113 = vmatpush1.msra.mxu0 %v83
    %114 = vmatprep.subr.mxu0 0.0
    %115 = vmatpush1.msra.mxu0 %v84
    %116 = vmatprep.subr.mxu0 0.0
    %117 = vmatpush1.msra.mxu0 %v85
    %118 = vmatprep.subr.mxu0 0.0
    %119 = vmatpush1.msra.mxu0 %v86
    %120 = vmatprep.subr.mxu0 0.0
    %121 = vmatpush1.msra.mxu0 %v87
    %122 = vmatprep.subr.mxu0 0.0
    %123 = vmatpush1.msra.mxu0 0.0
    %124 = vmatprep.subr.mxu0 0.0
    %125 = vmatpush1.msra.mxu0 0.0
    %126 = vmatprep.subr.mxu0 0.0
    %127 = vmatpush1.msra.mxu0 0.0
    %128 = vmatprep.subr.mxu0 0.0
    %129 = vmatpush1.msra.mxu0 0.0
    %130 = vmatprep.subr.mxu0 0.0
    %131 = vmatpush1.msra.mxu0 0.0
    %132 = vmatprep.subr.mxu0 0.0
    %133 = vmatpush1.msra.mxu0 0.0
    %134 = vmatprep.subr.mxu0 0.0
    %135 = vmatpush1.msra.mxu0 0.0
    %136 = vmatprep.subr.mxu0 0.0
    %137 = vmatpush1.msra.mxu0 0.0
    %138 = vmatprep.subr.mxu0 0.0
    %139 = vmatpush1.msra.mxu0 0.0
    %140 = vmatprep.subr.mxu0 0.0
    %141 = vmatpush1.msra.mxu0 0.0
    %142 = vmatprep.subr.mxu0 0.0
    %143 = vmatpush1.msra.mxu0 0.0
    %144 = vmatprep.subr.mxu0 0.0
    %145 = vmatpush1.msra.mxu0 0.0
    %146 = vmatprep.subr.mxu0 0.0
    %147 = vmatpush1.msra.mxu0 0.0
    %148 = vmatprep.subr.mxu0 0.0
    %149 = vmatpush1.msra.mxu0 0.0
    %150 = vmatprep.subr.mxu0 0.0
    %151 = vmatpush1.msra.mxu0 0.0
    %152 = vmatprep.subr.mxu0 0.0
    %153 = vmatpush1.msra.mxu0 0.0
    %154 = vmatprep.mubr.f32.mxu0 0.0
    %155 = vmatmul.mubr.f32.gmra.mrb[0].mxu0 %v70
    %v156 = vpop.f32.mrb[0].mxu0
    %v157 = vadd.f32 %v88, %v156
    %v158 = vpop.f32.mrb[0].mxu0
    %159 = vmatprep.mubr.f32.mxu0 0.0
    %160 = vmatmul.mubr.f32.gmra.mrb[0].mxu0 %v71
    %v161 = vpop.f32.mrb[0].mxu0
    %v162 = vadd.f32 %v89, %v161
    %v163 = vpop.f32.mrb[0].mxu0
    %164 = vdwg.mxu0
    %v165 = vsub.f32 %v157, %v66
    %v166 = vsub.f32 %v162, %v67
    %v167 = vadd.f32 %v56, %v165
    %v168 = vadd.f32 %v57, %v166
    %v169 = vmax.f32 %v167, %v61
    %v170 = vmax.f32 %v168, %v61
    %v171 = vmin.f32 %v169, %v63
    %v172 = vmin.f32 %v170, %v63
    %v173 = vmul.f32 %v171, 2.0
    %v174 = vmul.f32 %v172, 2.0
    %v175 = vsub.f32 %v173, %v167
    %v176 = vsub.f32 %v174, %v168
    %177 = vmatprep.subr.mxu0 0.0
    %178 = vmatpush1.msra.mxu0 %v72
    %179 = vmatprep.subr.mxu0 0.0
    %180 = vmatpush1.msra.mxu0 %v73
    %181 = vmatprep.subr.mxu0 0.0
    %182 = vmatpush1.msra.mxu0 %v74
    %183 = vmatprep.subr.mxu0 0.0
    %184 = vmatpush1.msra.mxu0 %v75
    %185 = vmatprep.subr.mxu0 0.0
    %186 = vmatpush1.msra.mxu0 %v76
    %187 = vmatprep.subr.mxu0 0.0
    %188 = vmatpush1.msra.mxu0 %v77
    %189 = vmatprep.subr.mxu0 0.0
    %190 = vmatpush1.msra.mxu0 %v78
    %191 = vmatprep.subr.mxu0 0.0
    %192 = vmatpush1.msra.mxu0 %v79
    %193 = vmatprep.subr.mxu0 0.0
    %194 = vmatpush1.msra.mxu0 %v80
    %195 = vmatprep.subr.mxu0 0.0
    %196 = vmatpush1.msra.mxu0 %v81
    %197 = vmatprep.subr.mxu0 0.0
    %198 = vmatpush1.msra.mxu0 %v82
    %199 = vmatprep.subr.mxu0 0.0
    %200 = vmatpush1.msra.mxu0 %v83
    %201 = vmatprep.subr.mxu0 0.0
    %202 = vmatpush1.msra.mxu0 %v84
    %203 = vmatprep.subr.mxu0 0.0
    %204 = vmatpush1.msra.mxu0 %v85
    %205 = vmatprep.subr.mxu0 0.0
    %206 = vmatpush1.msra.mxu0 %v86
    %207 = vmatprep.subr.mxu0 0.0
    %208 = vmatpush1.msra.mxu0 %v87
    %209 = vmatprep.subr.mxu0 0.0
    %210 = vmatpush1.msra.mxu0 0.0
    %211 = vmatprep.subr.mxu0 0.0
    %212 = vmatpush1.msra.mxu0 0.0
    %213 = vmatprep.subr.mxu0 0.0
    %214 = vmatpush1.msra.mxu0 0.0
    %215 = vmatprep.subr.mxu0 0.0
    %216 = vmatpush1.msra.mxu0 0.0
    %217 = vmatprep.subr.mxu0 0.0
    %218 = vmatpush1.msra.mxu0 0.0
    %219 = vmatprep.subr.mxu0 0.0
    %220 = vmatpush1.msra.mxu0 0.0
    %221 = vmatprep.subr.mxu0 0.0
    %222 = vmatpush1.msra.mxu0 0.0
    %223 = vmatprep.subr.mxu0 0.0
    %224 = vmatpush1.msra.mxu0 0.0
    %225 = vmatprep.subr.mxu0 0.0
    %226 = vmatpush1.msra.mxu0 0.0
    %227 = vmatprep.subr.mxu0 0.0
    %228 = vmatpush1.msra.mxu0 0.0
    %229 = vmatprep.subr.mxu0 0.0
    %230 = vmatpush1.msra.mxu0 0.0
    %231 = vmatprep.subr.mxu0 0.0
    %232 = vmatpush1.msra.mxu0 0.0
    %233 = vmatprep.subr.mxu0 0.0
    %234 = vmatpush1.msra.mxu0 0.0
    %235 = vmatprep.subr.mxu0 0.0
    %236 = vmatpush1.msra.mxu0 0.0
    %237 = vmatprep.subr.mxu0 0.0
    %238 = vmatpush1.msra.mxu0 0.0
    %239 = vmatprep.subr.mxu0 0.0
    %240 = vmatpush1.msra.mxu0 0.0
    %241 = vmatprep.mubr.f32.mxu0 0.0
    %242 = vmatmul.mubr.f32.gmra.mrb[0].mxu0 %v175
    %v243 = vpop.f32.mrb[0].mxu0
    %v244 = vadd.f32 %v88, %v243
    %v245 = vpop.f32.mrb[0].mxu0
    %246 = vmatprep.mubr.f32.mxu0 0.0
    %247 = vmatmul.mubr.f32.gmra.mrb[0].mxu0 %v176
    %v248 = vpop.f32.mrb[0].mxu0
    %v249 = vadd.f32 %v89, %v248
    %v250 = vpop.f32.mrb[0].mxu0
    %251 = vdwg.mxu0
    %v252 = vsub.f32 %v244, %v171
    %v253 = vsub.f32 %v249, %v172
    %v254 = vadd.f32 %v167, %v252
    %v255 = vadd.f32 %v168, %v253
    %v256 = vmax.f32 %v254, %v61
    %v257 = vmax.f32 %v255, %v61
    %v258 = vmin.f32 %v256, %v63
    %v259 = vmin.f32 %v257, %v63
    %v260 = vmul.f32 %v258, 2.0
    %v261 = vmul.f32 %v259, 2.0
    %v262 = vsub.f32 %v260, %v254
    %v263 = vsub.f32 %v261, %v255
    %264 = vmatprep.subr.mxu0 0.0
    %265 = vmatpush1.msra.mxu0 %v72
    %266 = vmatprep.subr.mxu0 0.0
    %267 = vmatpush1.msra.mxu0 %v73
    %268 = vmatprep.subr.mxu0 0.0
    %269 = vmatpush1.msra.mxu0 %v74
    %270 = vmatprep.subr.mxu0 0.0
    %271 = vmatpush1.msra.mxu0 %v75
    %272 = vmatprep.subr.mxu0 0.0
    %273 = vmatpush1.msra.mxu0 %v76
    %274 = vmatprep.subr.mxu0 0.0
    %275 = vmatpush1.msra.mxu0 %v77
    %276 = vmatprep.subr.mxu0 0.0
    %277 = vmatpush1.msra.mxu0 %v78
    %278 = vmatprep.subr.mxu0 0.0
    %279 = vmatpush1.msra.mxu0 %v79
    %280 = vmatprep.subr.mxu0 0.0
    %281 = vmatpush1.msra.mxu0 %v80
    %282 = vmatprep.subr.mxu0 0.0
    %283 = vmatpush1.msra.mxu0 %v81
    %284 = vmatprep.subr.mxu0 0.0
    %285 = vmatpush1.msra.mxu0 %v82
    %286 = vmatprep.subr.mxu0 0.0
    %287 = vmatpush1.msra.mxu0 %v83
    %288 = vmatprep.subr.mxu0 0.0
    %289 = vmatpush1.msra.mxu0 %v84
    %290 = vmatprep.subr.mxu0 0.0
    %291 = vmatpush1.msra.mxu0 %v85
    %292 = vmatprep.subr.mxu0 0.0
    %293 = vmatpush1.msra.mxu0 %v86
    %294 = vmatprep.subr.mxu0 0.0
    %295 = vmatpush1.msra.mxu0 %v87
    %296 = vmatprep.subr.mxu0 0.0
    %297 = vmatpush1.msra.mxu0 0.0
    %298 = vmatprep.subr.mxu0 0.0
    %299 = vmatpush1.msra.mxu0 0.0
    %300 = vmatprep.subr.mxu0 0.0
    %301 = vmatpush1.msra.mxu0 0.0
    %302 = vmatprep.subr.mxu0 0.0
    %303 = vmatpush1.msra.mxu0 0.0
    %304 = vmatprep.subr.mxu0 0.0
    %305 = vmatpush1.msra.mxu0 0.0
    %306 = vmatprep.subr.mxu0 0.0
    %307 = vmatpush1.msra.mxu0 0.0
    %308 = vmatprep.subr.mxu0 0.0
    %309 = vmatpush1.msra.mxu0 0.0
    %310 = vmatprep.subr.mxu0 0.0
    %311 = vmatpush1.msra.mxu0 0.0
    %312 = vmatprep.subr.mxu0 0.0
    %313 = vmatpush1.msra.mxu0 0.0
    %314 = vmatprep.subr.mxu0 0.0
    %315 = vmatpush1.msra.mxu0 0.0
    %316 = vmatprep.subr.mxu0 0.0
    %317 = vmatpush1.msra.mxu0 0.0
    %318 = vmatprep.subr.mxu0 0.0
    %319 = vmatpush1.msra.mxu0 0.0
    %320 = vmatprep.subr.mxu0 0.0
    %321 = vmatpush1.msra.mxu0 0.0
    %322 = vmatprep.subr.mxu0 0.0
    %323 = vmatpush1.msra.mxu0 0.0
    %324 = vmatprep.subr.mxu0 0.0
    %325 = vmatpush1.msra.mxu0 0.0
    %326 = vmatprep.subr.mxu0 0.0
    %327 = vmatpush1.msra.mxu0 0.0
    %328 = vmatprep.mubr.f32.mxu0 0.0
    %329 = vmatmul.mubr.f32.gmra.mrb[0].mxu0 %v262
    %v330 = vpop.f32.mrb[0].mxu0
    %v331 = vadd.f32 %v88, %v330
    %v332 = vpop.f32.mrb[0].mxu0
    %333 = vmatprep.mubr.f32.mxu0 0.0
    %334 = vmatmul.mubr.f32.gmra.mrb[0].mxu0 %v263
    %v335 = vpop.f32.mrb[0].mxu0
    %v336 = vadd.f32 %v89, %v335
    %v337 = vpop.f32.mrb[0].mxu0
    %338 = vdwg.mxu0
    %v339 = vsub.f32 %v331, %v258
    %v340 = vsub.f32 %v336, %v259
    %v341 = vadd.f32 %v254, %v339
    %v342 = vadd.f32 %v255, %v340
    %343 = vst [vmem:[#allocation8] sm:$0xff] %v341
    %344 = vst [vmem:[#allocation8 + $0x8] sm:$0xff] %v342
    // Predicated region
    $region26: #{tpu_custom_call.1} parent=1 // pred_check
      _
    $region27: #{tpu_custom_call.1} parent=1 // pred_check_branch
      %346 = sbr.rel (0) target = $region29
    $region28: #{tpu_custom_call.1} parent=1 // pred_region
      %s348 = ssub.s32 256, 256
      %349 = vsyncadd [#allocation4], %s348
      %s350 = sshll.u32 [#allocation8], 4
      %s351 = int_to_ptr.vmem [resolvable:$true] %s350
      %356 = dma.vmem_to_hbm [thread:$0]  %s351, 256, %s3, [#allocation4], 128, 128, 8
    $region29: #{tpu_custom_call.1} parent=1 // pred_fallthru
      _
    // Predicated region
    $region30: #{tpu_custom_call.1} parent=1 // pred_check
      _
    $region31: #{tpu_custom_call.1} parent=1 // pred_check_branch
      %358 = sbr.rel (0) target = $region33
    $region32: #{tpu_custom_call.1} parent=1 // pred_region
      %359 = dma.done [#allocation4], 256
    $region33: #{tpu_custom_call.1} parent=1 // pred_fallthru
      _
    %360 = vsyncpa [#allocation3], 1
    %361 = vsyncpa [#allocation6], 1
    %362 = vsyncpa [#allocation4], 1

</llo_original>
